<compile_context>
chip_gen: v7x
topology: tpu7x:2x2x1
jax: 0.10.0
libtpu: 0.0.40
codegen_flags: <defaults>
</compile_context>

<pallas_src>
import functools

import jax
import jax.numpy as jnp
from jax.experimental import pallas as pl
from jax.experimental.pallas import tpu as pltpu

# ------------------------- config (small synthetic sizes) -------------------------
LaBSE_DIM = 32    # hidden dim (original model: 768)
N_HEAD    = 1     # MULTI_HEAD_DIM; .squeeze(1) in MyEmbedder implies 1 head
N_NODES   = 8     # neighborhood size n
BATCH     = 2
GAT_NUM   = 2     # args.gat_num
NEG_SLOPE = 0.2   # LeakyReLU slope
NEG_BIG   = -1e30 # finite "-inf": exp underflows to exact 0, NaN-safe for all-masked rows
# args.center_norm = args.neighbor_norm = args.combine = args.emb_norm = True (exercised below)


def _l2norm(x, eps=1e-12):
    # F.normalize(p=2, dim=-1): x / max(||x||, eps)  == x * rsqrt(max(sum_sq, eps^2))
    ss = jnp.sum(x * x, axis=-1, keepdims=True)
    return x * jax.lax.rsqrt(jnp.maximum(ss, eps * eps))


# ------------------------- fused kernel: gat_num x GAT + combine -------------------------
def _fused_kernel(batch_ref, w_ref, vecs_ref, wmlp_ref, o_ref, *, gat_num, d):
    bt, n, _ = batch_ref.shape

    x    = batch_ref[...]                          # (bt, n, d+n) f32, one DMA per step
    feat = x[:, :, :d]                             # node features (bt, n, d)
    adj  = x[:, :, d:]                             # adjacency    (bt, n, n)

    w_bf  = w_ref[...]                             # (d, d)   bf16 (pre-cast in wrapper)
    vecs  = vecs_ref[...]                          # (4, d)   f32
    a_src = vecs[0:1, :]                           # (1, d)
    a_dst = vecs[1:2, :]                           # (1, d)
    bias  = vecs[2:3, :]                           # (1, d)  GAT bias
    b_mlp = vecs[3:4, :]                           # (1, d)  MLP bias
    wmlp  = wmlp_ref[...]                          # (2d, d)  bf16, rows = [w1; w2]

    # loop-invariant mask: keep = adj | I  (self-loops always kept, as in the reference)
    row  = jax.lax.broadcasted_iota(jnp.int32, (n, n), 0)
    col  = jax.lax.broadcasted_iota(jnp.int32, (n, n), 1)
    keep = (adj > 0.5) | (row == col)[None, :, :]  # (bt, n, n)

    h2 = feat.reshape(bt * n, d)                   # flat 2-D carry -> one dense MXU matmul/layer
    h3 = feat                                      # 3-D view of the latest layer output
    for _ in range(gat_num):                       # gat_num is static (=2): unrolled
        # ---- projection: single dense bf16 matmul, f32 accumulation ----
        hp2 = jnp.dot(h2.astype(jnp.bfloat16), w_bf,
                      preferred_element_type=jnp.float32)                 # (bt*n, d) f32

        # ---- attention logits (VPU multiply + lane reduce; f32 elementwise) ----
        t   = jnp.tanh(hp2)                                               # (bt*n, d)
        src = jnp.sum(t * a_src, axis=-1, keepdims=True).reshape(bt, n, 1)
        dst = jnp.sum(t * a_dst, axis=-1, keepdims=True).reshape(bt, n, 1)
        attn = src + jnp.transpose(dst, (0, 2, 1))                        # (bt, n, n)
        attn = jnp.where(attn > 0, attn, NEG_SLOPE * attn)                # LeakyReLU(0.2)
        attn = jnp.where(keep, attn, NEG_BIG)                             # mask (diag kept)

        # ---- softmax over neighbors ----
        m = jnp.max(attn, axis=-1, keepdims=True)
        e = jnp.exp(attn - m)
        denom = jnp.sum(e, axis=-1, keepdims=True)
        p = e * pl.reciprocal(denom, approx=True)                         # EUP reciprocal
        # TODO(synk): nn.Dropout on attention omitted (identity at inference / eval mode)

        # ---- aggregate (bf16 operands, f32 accumulation) ----
        h3 = jnp.einsum('bij,bjd->bid',
                        p.astype(jnp.bfloat16),
                        hp2.reshape(bt, n, d).astype(jnp.bfloat16),
                        preferred_element_type=jnp.float32) + bias        # (bt, n, d) f32
        h2 = h3.reshape(bt * n, d)

    # ---- combine: normalize, concat, Linear(2D->D), normalize ----
    center = _l2norm(feat[:, 0, :])                      # args.center_norm    (bt, d)
    neigh  = _l2norm(h3[:, 0, :])                        # args.neighbor_norm  (bt, d)
    cat = jnp.concatenate([center, neigh], axis=-1).astype(jnp.bfloat16)  # (bt, 2d)
    y = jnp.dot(cat, wmlp, preferred_element_type=jnp.float32) + b_mlp    # args.combine
    o_ref[...] = _l2norm(y)                              # args.emb_norm, lane-dense 2-D store


# ------------------------- MyEmbedder.forward (single pallas_call) -------------------------
@functools.partial(jax.jit, static_argnames=("gat_num", "b_tile"))
def my_embedder_forward(batch, w, a_src_row, a_dst_row, gat_bias, w1, w2, b_mlp,
                        *, gat_num=GAT_NUM, b_tile=None):
    bs, n, dn = batch.shape
    d = LaBSE_DIM
    if b_tile is None:
        # v5e/v6e (1 TensorCore): one fat step.  v7x at real sizes: use b_tile = bs // 2 so each
        # of the two TCs gets one MXU-sized step (keep b_tile a multiple of 8 and b_tile*n >= 256).
        b_tile = bs
    assert bs % b_tile == 0
    grid = (bs // b_tile,)

    # Pre-cast / pack loop-invariant parameters: 4 DMA streams instead of 9, bf16 weights.
    w_bf    = w.astype(jnp.bfloat16)                                     # (d, d)
    vecs    = jnp.concatenate([a_src_row, a_dst_row, gat_bias, b_mlp], axis=0)  # (4, d) f32
    wmlp_bf = jnp.concatenate([w1, w2], axis=0).astype(jnp.bfloat16)     # (2d, d)

    kernel = functools.partial(_fused_kernel, gat_num=gat_num, d=d)
    out = pl.pallas_call(
        kernel,
        out_shape=jax.ShapeDtypeStruct((bs, d), jnp.float32),
        grid=grid,
        in_specs=[
            pl.BlockSpec((b_tile, n, dn), lambda b: (b, 0, 0)),   # full batch tile (feat||adj)
            # At real D=768 add pipeline_mode=pl.Buffered(1) to the three weight specs below
            # (loop-invariant index) to avoid double-buffering them against v7x's 64 MiB VMEM.
            pl.BlockSpec((d, d), lambda b: (0, 0)),               # GAT W (bf16)
            pl.BlockSpec((4, d), lambda b: (0, 0)),               # [a_src; a_dst; gat_bias; b_mlp]
            pl.BlockSpec((2 * d, d), lambda b: (0, 0)),           # MLP [w1; w2] (bf16)
        ],
        out_specs=pl.BlockSpec((b_tile, d), lambda b: (b, 0)),
        compiler_params=pltpu.CompilerParams(
            dimension_semantics=("parallel",),
            vmem_limit_bytes=64 * 1024 * 1024,
        ),
    )(batch, w_bf, vecs, wmlp_bf)
    return out                                  # (bs, D), no post-kernel slice


# ------------------------- pure-JAX reference (f32, exact) -------------------------
def reference_forward(batch, w, a_src, a_dst, bias, w1, w2, b_mlp, gat_num=GAT_NUM):
    d = LaBSE_DIM
    feat = batch[:, :, :d]
    adj  = batch[:, :, d:]
    bs, n, _ = feat.shape
    eye = jnp.eye(n, dtype=bool)
    h = feat
    for _ in range(gat_num):
        hp = h @ w
        t = jnp.tanh(hp)
        src = t @ a_src                     # (bs, n, 1)
        dst = t @ a_dst                     # (bs, n, 1)
        attn = src + jnp.swapaxes(dst, 1, 2)
        attn = jnp.where(attn > 0, attn, NEG_SLOPE * attn)
        keep = (adj > 0.5) | eye[None]
        attn = jnp.where(keep, attn, -jnp.inf)
        attn = jax.nn.softmax(attn, axis=-1)
        h = attn @ hp + bias

    def l2n(x):
        nrm = jnp.sqrt(jnp.sum(x * x, axis=-1, keepdims=True))
        return x / jnp.maximum(nrm, 1e-12)

    c, cn = l2n(feat[:, 0]), l2n(h[:, 0])
    return l2n(c @ w1 + cn @ w2 + b_mlp)


if __name__ == "__main__":
    key = jax.random.PRNGKey(0)
    k_w, k_as, k_ad, k_mlpw, k_mlpb, k_feat, k_adj = jax.random.split(key, 7)
    D = LaBSE_DIM

    # GAT parameters (n_head = 1), xavier-uniform-style deterministic init
    lim_w = (6.0 / (D + D)) ** 0.5
    w = jax.random.uniform(k_w, (D, D), jnp.float32, -lim_w, lim_w)
    lim_a = (6.0 / (D + 1)) ** 0.5
    a_src = jax.random.uniform(k_as, (D, 1), jnp.float32, -lim_a, lim_a)
    a_dst = jax.random.uniform(k_ad, (D, 1), jnp.float32, -lim_a, lim_a)
    gat_bias = jnp.zeros((1, D), jnp.float32)           # nn.init.constant_(bias, 0)

    # attn_mlp = Linear(2D -> D); PyTorch weight (D, 2D), y = x @ W.T + b
    lim_m = (1.0 / (2 * D)) ** 0.5
    w_mlp = jax.random.uniform(k_mlpw, (D, 2 * D), jnp.float32, -lim_m, lim_m)
    b_mlp = jax.random.uniform(k_mlpb, (1, D), jnp.float32, -lim_m, lim_m)
    w_t = w_mlp.T                                        # (2D, D)
    w1, w2 = w_t[:D], w_t[D:]

    # synthetic input batch: [bs, n, D + n] = features || adjacency
    feat = jax.random.normal(k_feat, (BATCH, N_NODES, D), jnp.float32)
    adj = (jax.random.uniform(k_adj, (BATCH, N_NODES, N_NODES)) > 0.5).astype(jnp.float32)
    batch = jnp.concatenate([feat, adj], axis=-1)        # (2, 8, 40)

    out = my_embedder_forward(batch, w, a_src.reshape(1, D), a_dst.reshape(1, D),
                              gat_bias, w1, w2, b_mlp)
    out = jax.block_until_ready(out)

    ref = reference_forward(batch, w, a_src, a_dst, gat_bias, w1, w2, b_mlp)
    err = float(jnp.max(jnp.abs(out - ref)))
    assert out.shape == (BATCH, D) and bool(jnp.all(jnp.isfinite(out)))
    assert err < 5e-2, f"max abs err vs f32 reference: {err}"
    print("KERNEL_OK")
</pallas_src>

<mosaic_0001>
module attributes {stable_mosaic.version = 11 : i64} {
  func.func @_fused_kernel(%arg0: i32, %arg1: memref<2x8x40xf32, #tpu.memory_space<vmem>>, %arg2: memref<32x32xbf16, #tpu.memory_space<vmem>>, %arg3: memref<4x32xf32, #tpu.memory_space<vmem>>, %arg4: memref<64x32xbf16, #tpu.memory_space<vmem>>, %arg5: memref<2x32xf32, #tpu.memory_space<vmem>>) attributes {dimension_semantics = [#tpu.dimension_semantics<parallel>], iteration_bounds = array<i64: 1>, scalar_prefetch = 0 : i64, scratch_operands = 0 : i64, tpu.core_type = #tpu.core_type<tc>, window_params = [{transform_indices = @transform_0, window_bounds = array<i64: 2, 8, 40>}, {pipeline_mode = #tpu.pipeline_mode<synchronous>, transform_indices = @transform_1, window_bounds = array<i64: 32, 32>}, {pipeline_mode = #tpu.pipeline_mode<synchronous>, transform_indices = @transform_2, window_bounds = array<i64: 4, 32>}, {pipeline_mode = #tpu.pipeline_mode<synchronous>, transform_indices = @transform_3, window_bounds = array<i64: 64, 32>}, {transform_indices = @transform_4, window_bounds = array<i64: 2, 32>}]} {
    %c0 = arith.constant 0 : index
    %c0_0 = arith.constant 0 : index
    %c0_1 = arith.constant 0 : index
    %0 = vector.load %arg1[%c0, %c0_0, %c0_1] : memref<2x8x40xf32, #tpu.memory_space<vmem>>, vector<2x8x40xf32>
    %1 = vector.extract_strided_slice %0 {offsets = [0, 0, 0], sizes = [2, 8, 32], strides = [1, 1, 1]} : vector<2x8x40xf32> to vector<2x8x32xf32>
    %2 = vector.extract_strided_slice %0 {offsets = [0, 0, 32], sizes = [2, 8, 8], strides = [1, 1, 1]} : vector<2x8x40xf32> to vector<2x8x8xf32>
    %c0_2 = arith.constant 0 : index
    %c0_3 = arith.constant 0 : index
    %3 = vector.load %arg2[%c0_2, %c0_3] : memref<32x32xbf16, #tpu.memory_space<vmem>>, vector<32x32xbf16>
    %c0_4 = arith.constant 0 : index
    %c0_5 = arith.constant 0 : index
    %4 = vector.load %arg3[%c0_4, %c0_5] : memref<4x32xf32, #tpu.memory_space<vmem>>, vector<4x32xf32>
    %5 = vector.extract_strided_slice %4 {offsets = [0, 0], sizes = [1, 32], strides = [1, 1]} : vector<4x32xf32> to vector<1x32xf32>
    %6 = vector.extract_strided_slice %4 {offsets = [1, 0], sizes = [1, 32], strides = [1, 1]} : vector<4x32xf32> to vector<1x32xf32>
    %7 = vector.extract_strided_slice %4 {offsets = [2, 0], sizes = [1, 32], strides = [1, 1]} : vector<4x32xf32> to vector<1x32xf32>
    %8 = vector.extract_strided_slice %4 {offsets = [3, 0], sizes = [1, 32], strides = [1, 1]} : vector<4x32xf32> to vector<1x32xf32>
    %c0_6 = arith.constant 0 : index
    %c0_7 = arith.constant 0 : index
    %9 = vector.load %arg4[%c0_6, %c0_7] : memref<64x32xbf16, #tpu.memory_space<vmem>>, vector<64x32xbf16>
    %10 = tpu.iota {dimensions = array<i32: 0>} : vector<8x8xi32>
    %11 = tpu.iota {dimensions = array<i32: 1>} : vector<8x8xi32>
    %cst = arith.constant 5.000000e-01 : f32
    %12 = vector.broadcast %cst : f32 to vector<2x8x8xf32>
    %13 = arith.cmpf ogt, %2, %12 : vector<2x8x8xf32>
    %14 = arith.cmpi eq, %10, %11 : vector<8x8xi32>
    %15 = vector.shape_cast %14 : vector<8x8xi1> to vector<1x8x8xi1>
    %16 = vector.broadcast %15 : vector<1x8x8xi1> to vector<2x8x8xi1>
    %17 = arith.ori %13, %16 : vector<2x8x8xi1>
    %18 = vector.shape_cast %1 : vector<2x8x32xf32> to vector<16x32xf32>
    %19 = arith.truncf %18 : vector<16x32xf32> to vector<16x32xbf16>
    %cst_8 = arith.constant dense<0.000000e+00> : vector<16x32xf32>
    %20 = tpu.matmul %19, %3, %cst_8 {dimension_numbers = #tpu.dot_dimension_numbers<[1], [0], [0], [1], [0, 0, 1, 1], [], []>} : vector<16x32xbf16>, vector<32x32xbf16>, vector<16x32xf32> -> vector<16x32xf32>
    %21 = math.tanh %20 : vector<16x32xf32>
    %22 = vector.broadcast %5 : vector<1x32xf32> to vector<16x32xf32>
    %23 = arith.mulf %21, %22 : vector<16x32xf32>
    %cst_9 = arith.constant dense<0.000000e+00> : vector<16xf32>
    %24 = vector.multi_reduction <add>, %23, %cst_9 [1] : vector<16x32xf32> to vector<16xf32>
    %25 = vector.shape_cast %24 : vector<16xf32> to vector<16x1xf32>
    %26 = vector.shape_cast %25 : vector<16x1xf32> to vector<2x8x1xf32>
    %27 = vector.broadcast %6 : vector<1x32xf32> to vector<16x32xf32>
    %28 = arith.mulf %21, %27 : vector<16x32xf32>
    %cst_10 = arith.constant dense<0.000000e+00> : vector<16xf32>
    %29 = vector.multi_reduction <add>, %28, %cst_10 [1] : vector<16x32xf32> to vector<16xf32>
    %30 = vector.shape_cast %29 : vector<16xf32> to vector<16x1xf32>
    %31 = vector.shape_cast %30 : vector<16x1xf32> to vector<2x8x1xf32>
    %32 = tpu.transpose %31, [0, 2, 1] : vector<2x8x1xf32> -> vector<2x1x8xf32>
    %33 = vector.broadcast %26 : vector<2x8x1xf32> to vector<2x8x8xf32>
    %34 = vector.broadcast %32 : vector<2x1x8xf32> to vector<2x8x8xf32>
    %35 = arith.addf %33, %34 : vector<2x8x8xf32>
    %cst_11 = arith.constant 0.000000e+00 : f32
    %36 = vector.broadcast %cst_11 : f32 to vector<2x8x8xf32>
    %37 = arith.cmpf ogt, %35, %36 : vector<2x8x8xf32>
    %cst_12 = arith.constant 2.000000e-01 : f32
    %38 = vector.broadcast %cst_12 : f32 to vector<2x8x8xf32>
    %39 = arith.mulf %38, %35 : vector<2x8x8xf32>
    %40 = arith.select %37, %35, %39 : vector<2x8x8xi1>, vector<2x8x8xf32>
    %cst_13 = arith.constant -1.000000e+30 : f32
    %41 = vector.broadcast %cst_13 : f32 to vector<2x8x8xf32>
    %42 = arith.select %17, %40, %41 : vector<2x8x8xi1>, vector<2x8x8xf32>
    %cst_14 = arith.constant dense<0xFF800000> : vector<2x8xf32>
    %43 = vector.multi_reduction <maximumf>, %42, %cst_14 [2] : vector<2x8x8xf32> to vector<2x8xf32>
    %44 = vector.shape_cast %43 : vector<2x8xf32> to vector<2x8x1xf32>
    %45 = vector.broadcast %44 : vector<2x8x1xf32> to vector<2x8x8xf32>
    %46 = arith.subf %42, %45 : vector<2x8x8xf32>
    %47 = math.exp %46 : vector<2x8x8xf32>
    %cst_15 = arith.constant dense<0.000000e+00> : vector<2x8xf32>
    %48 = vector.multi_reduction <add>, %47, %cst_15 [2] : vector<2x8x8xf32> to vector<2x8xf32>
    %49 = vector.shape_cast %48 : vector<2x8xf32> to vector<2x8x1xf32>
    %50 = tpu.reciprocal %49 {approx = true} : vector<2x8x1xf32> -> vector<2x8x1xf32>
    %51 = vector.broadcast %50 : vector<2x8x1xf32> to vector<2x8x8xf32>
    %52 = arith.mulf %47, %51 : vector<2x8x8xf32>
    %53 = arith.truncf %52 : vector<2x8x8xf32> to vector<2x8x8xbf16>
    %54 = vector.shape_cast %20 : vector<16x32xf32> to vector<2x8x32xf32>
    %55 = arith.truncf %54 : vector<2x8x32xf32> to vector<2x8x32xbf16>
    "tpu.trace_start"() <{level = 10 : i32, message = "bij,bjd->bid"}> : () -> ()
    %cst_16 = arith.constant dense<0.000000e+00> : vector<2x8x32xf32>
    %56 = tpu.matmul %53, %55, %cst_16 {dimension_numbers = #tpu.dot_dimension_numbers<[2], [1], [1], [2], [0, 0, 0, 1, 1, 2], [0], [0]>} : vector<2x8x8xbf16>, vector<2x8x32xbf16>, vector<2x8x32xf32> -> vector<2x8x32xf32>
    "tpu.trace_stop"() : () -> ()
    %57 = vector.shape_cast %7 : vector<1x32xf32> to vector<1x1x32xf32>
    %58 = vector.broadcast %57 : vector<1x1x32xf32> to vector<2x8x32xf32>
    %59 = arith.addf %56, %58 : vector<2x8x32xf32>
    %60 = vector.shape_cast %59 : vector<2x8x32xf32> to vector<16x32xf32>
    %61 = arith.truncf %60 : vector<16x32xf32> to vector<16x32xbf16>
    %cst_17 = arith.constant dense<0.000000e+00> : vector<16x32xf32>
    %62 = tpu.matmul %61, %3, %cst_17 {dimension_numbers = #tpu.dot_dimension_numbers<[1], [0], [0], [1], [0, 0, 1, 1], [], []>} : vector<16x32xbf16>, vector<32x32xbf16>, vector<16x32xf32> -> vector<16x32xf32>
    %63 = math.tanh %62 : vector<16x32xf32>
    %64 = vector.broadcast %5 : vector<1x32xf32> to vector<16x32xf32>
    %65 = arith.mulf %63, %64 : vector<16x32xf32>
    %cst_18 = arith.constant dense<0.000000e+00> : vector<16xf32>
    %66 = vector.multi_reduction <add>, %65, %cst_18 [1] : vector<16x32xf32> to vector<16xf32>
    %67 = vector.shape_cast %66 : vector<16xf32> to vector<16x1xf32>
    %68 = vector.shape_cast %67 : vector<16x1xf32> to vector<2x8x1xf32>
    %69 = vector.broadcast %6 : vector<1x32xf32> to vector<16x32xf32>
    %70 = arith.mulf %63, %69 : vector<16x32xf32>
    %cst_19 = arith.constant dense<0.000000e+00> : vector<16xf32>
    %71 = vector.multi_reduction <add>, %70, %cst_19 [1] : vector<16x32xf32> to vector<16xf32>
    %72 = vector.shape_cast %71 : vector<16xf32> to vector<16x1xf32>
    %73 = vector.shape_cast %72 : vector<16x1xf32> to vector<2x8x1xf32>
    %74 = tpu.transpose %73, [0, 2, 1] : vector<2x8x1xf32> -> vector<2x1x8xf32>
    %75 = vector.broadcast %68 : vector<2x8x1xf32> to vector<2x8x8xf32>
    %76 = vector.broadcast %74 : vector<2x1x8xf32> to vector<2x8x8xf32>
    %77 = arith.addf %75, %76 : vector<2x8x8xf32>
    %cst_20 = arith.constant 0.000000e+00 : f32
    %78 = vector.broadcast %cst_20 : f32 to vector<2x8x8xf32>
    %79 = arith.cmpf ogt, %77, %78 : vector<2x8x8xf32>
    %cst_21 = arith.constant 2.000000e-01 : f32
    %80 = vector.broadcast %cst_21 : f32 to vector<2x8x8xf32>
    %81 = arith.mulf %80, %77 : vector<2x8x8xf32>
    %82 = arith.select %79, %77, %81 : vector<2x8x8xi1>, vector<2x8x8xf32>
    %cst_22 = arith.constant -1.000000e+30 : f32
    %83 = vector.broadcast %cst_22 : f32 to vector<2x8x8xf32>
    %84 = arith.select %17, %82, %83 : vector<2x8x8xi1>, vector<2x8x8xf32>
    %cst_23 = arith.constant dense<0xFF800000> : vector<2x8xf32>
    %85 = vector.multi_reduction <maximumf>, %84, %cst_23 [2] : vector<2x8x8xf32> to vector<2x8xf32>
    %86 = vector.shape_cast %85 : vector<2x8xf32> to vector<2x8x1xf32>
    %87 = vector.broadcast %86 : vector<2x8x1xf32> to vector<2x8x8xf32>
    %88 = arith.subf %84, %87 : vector<2x8x8xf32>
    %89 = math.exp %88 : vector<2x8x8xf32>
    %cst_24 = arith.constant dense<0.000000e+00> : vector<2x8xf32>
    %90 = vector.multi_reduction <add>, %89, %cst_24 [2] : vector<2x8x8xf32> to vector<2x8xf32>
    %91 = vector.shape_cast %90 : vector<2x8xf32> to vector<2x8x1xf32>
    %92 = tpu.reciprocal %91 {approx = true} : vector<2x8x1xf32> -> vector<2x8x1xf32>
    %93 = vector.broadcast %92 : vector<2x8x1xf32> to vector<2x8x8xf32>
    %94 = arith.mulf %89, %93 : vector<2x8x8xf32>
    %95 = arith.truncf %94 : vector<2x8x8xf32> to vector<2x8x8xbf16>
    %96 = vector.shape_cast %62 : vector<16x32xf32> to vector<2x8x32xf32>
    %97 = arith.truncf %96 : vector<2x8x32xf32> to vector<2x8x32xbf16>
    "tpu.trace_start"() <{level = 10 : i32, message = "bij,bjd->bid"}> : () -> ()
    %cst_25 = arith.constant dense<0.000000e+00> : vector<2x8x32xf32>
    %98 = tpu.matmul %95, %97, %cst_25 {dimension_numbers = #tpu.dot_dimension_numbers<[2], [1], [1], [2], [0, 0, 0, 1, 1, 2], [0], [0]>} : vector<2x8x8xbf16>, vector<2x8x32xbf16>, vector<2x8x32xf32> -> vector<2x8x32xf32>
    "tpu.trace_stop"() : () -> ()
    %99 = vector.shape_cast %7 : vector<1x32xf32> to vector<1x1x32xf32>
    %100 = vector.broadcast %99 : vector<1x1x32xf32> to vector<2x8x32xf32>
    %101 = arith.addf %98, %100 : vector<2x8x32xf32>
    %102 = vector.extract_strided_slice %1 {offsets = [0, 0, 0], sizes = [2, 1, 32], strides = [1, 1, 1]} : vector<2x8x32xf32> to vector<2x1x32xf32>
    %103 = vector.shape_cast %102 : vector<2x1x32xf32> to vector<2x32xf32>
    %104 = arith.mulf %103, %103 : vector<2x32xf32>
    %cst_26 = arith.constant dense<0.000000e+00> : vector<2xf32>
    %105 = vector.multi_reduction <add>, %104, %cst_26 [1] : vector<2x32xf32> to vector<2xf32>
    %106 = vector.shape_cast %105 : vector<2xf32> to vector<2x1xf32>
    %cst_27 = arith.constant 1.000000e-24 : f32
    %107 = vector.broadcast %cst_27 : f32 to vector<2x1xf32>
    %108 = arith.maximumf %106, %107 : vector<2x1xf32>
    %109 = math.rsqrt %108 : vector<2x1xf32>
    %110 = vector.broadcast %109 : vector<2x1xf32> to vector<2x32xf32>
    %111 = arith.mulf %103, %110 : vector<2x32xf32>
    %112 = vector.extract_strided_slice %101 {offsets = [0, 0, 0], sizes = [2, 1, 32], strides = [1, 1, 1]} : vector<2x8x32xf32> to vector<2x1x32xf32>
    %113 = vector.shape_cast %112 : vector<2x1x32xf32> to vector<2x32xf32>
    %114 = arith.mulf %113, %113 : vector<2x32xf32>
    %cst_28 = arith.constant dense<0.000000e+00> : vector<2xf32>
    %115 = vector.multi_reduction <add>, %114, %cst_28 [1] : vector<2x32xf32> to vector<2xf32>
    %116 = vector.shape_cast %115 : vector<2xf32> to vector<2x1xf32>
    %cst_29 = arith.constant 1.000000e-24 : f32
    %117 = vector.broadcast %cst_29 : f32 to vector<2x1xf32>
    %118 = arith.maximumf %116, %117 : vector<2x1xf32>
    %119 = math.rsqrt %118 : vector<2x1xf32>
    %120 = vector.broadcast %119 : vector<2x1xf32> to vector<2x32xf32>
    %121 = arith.mulf %113, %120 : vector<2x32xf32>
    %122 = tpu.concatenate %111, %121 in 1 : vector<2x32xf32>, vector<2x32xf32> -> vector<2x64xf32>
    %123 = arith.truncf %122 : vector<2x64xf32> to vector<2x64xbf16>
    %cst_30 = arith.constant dense<0.000000e+00> : vector<2x32xf32>
    %124 = tpu.matmul %123, %9, %cst_30 {dimension_numbers = #tpu.dot_dimension_numbers<[1], [0], [0], [1], [0, 0, 1, 1], [], []>} : vector<2x64xbf16>, vector<64x32xbf16>, vector<2x32xf32> -> vector<2x32xf32>
    %125 = vector.broadcast %8 : vector<1x32xf32> to vector<2x32xf32>
    %126 = arith.addf %124, %125 : vector<2x32xf32>
    %127 = arith.mulf %126, %126 : vector<2x32xf32>
    %cst_31 = arith.constant dense<0.000000e+00> : vector<2xf32>
    %128 = vector.multi_reduction <add>, %127, %cst_31 [1] : vector<2x32xf32> to vector<2xf32>
    %129 = vector.shape_cast %128 : vector<2xf32> to vector<2x1xf32>
    %cst_32 = arith.constant 1.000000e-24 : f32
    %130 = vector.broadcast %cst_32 : f32 to vector<2x1xf32>
    %131 = arith.maximumf %129, %130 : vector<2x1xf32>
    %132 = math.rsqrt %131 : vector<2x1xf32>
    %133 = vector.broadcast %132 : vector<2x1xf32> to vector<2x32xf32>
    %134 = arith.mulf %126, %133 : vector<2x32xf32>
    %c0_33 = arith.constant 0 : index
    %c0_34 = arith.constant 0 : index
    %135 = vector.load %arg5[%c0_33, %c0_34] : memref<2x32xf32, #tpu.memory_space<vmem>>, vector<2x32xf32>
    tpu.vector_store %arg5[%c0_33, %c0_34], %134 {strides = array<i32>} : memref<2x32xf32, #tpu.memory_space<vmem>>, vector<2x32xf32>,
    return
  }
  func.func @transform_0(%arg0: i32) -> (i32, i32, i32) {
    %c0_i32 = arith.constant 0 : i32
    %c0_i32_0 = arith.constant 0 : i32
    %c0_i32_1 = arith.constant 0 : i32
    return %arg0, %c0_i32, %c0_i32_0 : i32, i32, i32
  }
  func.func @transform_1(%arg0: i32) -> (i32, i32) {
    %c0_i32 = arith.constant 0 : i32
    %c0_i32_0 = arith.constant 0 : i32
    %c0_i32_1 = arith.constant 0 : i32
    return %c0_i32, %c0_i32_0 : i32, i32
  }
  func.func @transform_2(%arg0: i32) -> (i32, i32) {
    %c0_i32 = arith.constant 0 : i32
    %c0_i32_0 = arith.constant 0 : i32
    %c0_i32_1 = arith.constant 0 : i32
    return %c0_i32, %c0_i32_0 : i32, i32
  }
  func.func @transform_3(%arg0: i32) -> (i32, i32) {
    %c0_i32 = arith.constant 0 : i32
    %c0_i32_0 = arith.constant 0 : i32
    %c0_i32_1 = arith.constant 0 : i32
    return %c0_i32, %c0_i32_0 : i32, i32
  }
  func.func @transform_4(%arg0: i32) -> (i32, i32) {
    %c0_i32 = arith.constant 0 : i32
    %c0_i32_0 = arith.constant 0 : i32
    return %arg0, %c0_i32 : i32, i32
  }
}

</mosaic_0001>

<llo_original>
// kernel: my_embedder_forward.1
$region0: #{my_embedder_forward.1}
  #allocation0 [shape = 'u32[]', space=smem, size = 0x4, offset = 0x4, fixed_abs, tag = 'smem constant byte address 0x4 - core index']
  #allocation1 [shape = 'u32[144,128]{1,0:T(1,128)}', space=vmem, size = 0x12000, scoped, tag = 'internal scratch']
  %s0 = inlined_call_operand.hbm [shape: f32[2,8,40], index: 0, kind: input, shape index: {}]
  %s1 = inlined_call_operand.hbm [shape: bf16[32,32], index: 1, kind: input, shape index: {}]
  %s2 = inlined_call_operand.hbm [shape: f32[4,32], index: 2, kind: input, shape index: {}]
  %s3 = inlined_call_operand.hbm [shape: bf16[64,32], index: 3, kind: input, shape index: {}]
  %s4 = inlined_call_operand.hbm [shape: f32[2,32], index: 4, kind: output, shape index: {}]
  %s5 = sld [smem:[#allocation0]]
  $region42: #{my_embedder_forward.1} parent=0
    _
  %s7 = ssub.s32 1, %s5
  %s8 = scalar_select 0, %s7, %s5
  $region1: #{my_embedder_forward.1} parent=0
    #allocation2 [shape = 'u8[8192]{0}', space=vmem, size = 0x2000, scoped, tag = 'input window, operand 0, single buffered']
    #allocation3 [shape = 's32[1]{0}', space=sflag, size = 0x4, scoped, tag = 'scoped memory for my_embedder_forward.1']
    #allocation4 [shape = 's32[1]{0}', space=sflag, size = 0x4, scoped, tag = 'scoped memory for my_embedder_forward.1']
    #allocation5 [shape = 'u8[8192]{0}', space=vmem, size = 0x2000, scoped, tag = 'input window, operand 1, single buffered']
    #allocation6 [shape = 's32[1]{0}', space=sflag, size = 0x4, scoped, tag = 'scoped memory for my_embedder_forward.1']
    #allocation7 [shape = 'u8[2048]{0}', space=vmem, size = 0x800, scoped, tag = 'input window, operand 2, single buffered']
    #allocation8 [shape = 'u8[16384]{0}', space=vmem, size = 0x4000, scoped, tag = 'input window, operand 3, single buffered']
    #allocation9 [shape = 's32[1]{0}', space=sflag, size = 0x4, scoped, tag = 'scoped memory for my_embedder_forward.1']
    #allocation10 [shape = 'u8[1024]{0}', space=vmem, size = 0x400, scoped, tag = 'output window, operand 0, single buffered']
    %9 = vsyncpa [#allocation3], 0
    %10 = vsyncpa [#allocation6], 0
    %11 = vsyncpa [#allocation9], 0
    %12 = vsyncpa [#allocation4], 0
    // Predicated region
    $region2: #{my_embedder_forward.1} parent=1 // pred_check
      _
    $region3: #{my_embedder_forward.1} parent=1 // pred_check_branch
      %14 = sbr.rel (0) target = $region5
    $region4: #{my_embedder_forward.1} parent=1 // pred_region
      %s16 = ssub.s32 256, 256
      %17 = vsyncadd [#allocation3], %s16
      %s18 = sshll.u32 [#allocation2], 4
      %s19 = int_to_ptr.vmem [resolvable:$true] %s18
      %24 = dma.hbm_to_vmem [thread:$0]  %s0, 256, %s19, [#allocation3], 128, 128, 8
    $region5: #{my_embedder_forward.1} parent=1 // pred_fallthru
      _
    // Predicated region
    $region6: #{my_embedder_forward.1} parent=1 // pred_check
      _
    $region7: #{my_embedder_forward.1} parent=1 // pred_check_branch
      %26 = sbr.rel (0) target = $region9
    $region8: #{my_embedder_forward.1} parent=1 // pred_region
      %s28 = ssub.s32 256, 256
      %29 = vsyncadd [#allocation6], %s28
      %s30 = sshll.u32 [#allocation5], 4
      %s31 = int_to_ptr.vmem [resolvable:$true] %s30
      %36 = dma.hbm_to_vmem [thread:$0]  %s1, 256, %s31, [#allocation6], 64, 64, 4
    $region9: #{my_embedder_forward.1} parent=1 // pred_fallthru
      _
    // Predicated region
    $region10: #{my_embedder_forward.1} parent=1 // pred_check
      _
    $region11: #{my_embedder_forward.1} parent=1 // pred_check_branch
      %38 = sbr.rel (0) target = $region13
    $region12: #{my_embedder_forward.1} parent=1 // pred_region
      %s40 = ssub.s32 64, 64
      %41 = vsyncadd [#allocation6], %s40
      %s43 = sshll.u32 [#allocation7], 4
      %s44 = int_to_ptr.vmem [resolvable:$true] %s43
      %46 = dma.hbm_to_vmem [thread:$0]  %s2, 64, %s44, [#allocation6]
    $region13: #{my_embedder_forward.1} parent=1 // pred_fallthru
      _
    // Predicated region
    $region14: #{my_embedder_forward.1} parent=1 // pred_check
      _
    $region15: #{my_embedder_forward.1} parent=1 // pred_check_branch
      %48 = sbr.rel (0) target = $region17
    $region16: #{my_embedder_forward.1} parent=1 // pred_region
      %s50 = ssub.s32 512, 512
      %51 = vsyncadd [#allocation9], %s50
      %s52 = sshll.u32 [#allocation8], 4
      %s53 = int_to_ptr.vmem [resolvable:$true] %s52
      %58 = dma.hbm_to_vmem [thread:$0]  %s3, 512, %s53, [#allocation9], 64, 64, 4
    $region17: #{my_embedder_forward.1} parent=1 // pred_fallthru
      _
    // Predicated region
    $region18: #{my_embedder_forward.1} parent=1 // pred_check
      _
    $region19: #{my_embedder_forward.1} parent=1 // pred_check_branch
      %60 = sbr.rel (0) target = $region21
    $region20: #{my_embedder_forward.1} parent=1 // pred_region
      %61 = dma.done [#allocation3], 256
    $region21: #{my_embedder_forward.1} parent=1 // pred_fallthru
      _
    // Predicated region
    $region22: #{my_embedder_forward.1} parent=1 // pred_check
      _
    $region23: #{my_embedder_forward.1} parent=1 // pred_check_branch
      %63 = sbr.rel (0) target = $region25
    $region24: #{my_embedder_forward.1} parent=1 // pred_region
      %64 = dma.done [#allocation6], 256
    $region25: #{my_embedder_forward.1} parent=1 // pred_fallthru
      _
    // Predicated region
    $region26: #{my_embedder_forward.1} parent=1 // pred_check
      _
    $region27: #{my_embedder_forward.1} parent=1 // pred_check_branch
      %66 = sbr.rel (0) target = $region29
    $region28: #{my_embedder_forward.1} parent=1 // pred_region
      %67 = dma.done [#allocation6], 64
    $region29: #{my_embedder_forward.1} parent=1 // pred_fallthru
      _
    // Predicated region
    $region30: #{my_embedder_forward.1} parent=1 // pred_check
      _
    $region31: #{my_embedder_forward.1} parent=1 // pred_check_branch
      %69 = sbr.rel (0) target = $region33
    $region32: #{my_embedder_forward.1} parent=1 // pred_region
      %70 = dma.done [#allocation9], 512
    $region33: #{my_embedder_forward.1} parent=1 // pred_fallthru
      _
    %v72 = vld [vmem:[#allocation2] sm:$0xff]
    %v73 = vld [vmem:[#allocation2 + $0x8] sm:$0xff]
    %v74 = vld [vmem:[#allocation5] sm:$0xf]
    %v75 = vld [vmem:[#allocation5 + $0x4] sm:$0xf]
    %v76 = vld [vmem:[#allocation5 + $0x8] sm:$0xf]
    %v77 = vld [vmem:[#allocation5 + $0xc] sm:$0xf]
    %v78 = vld [vmem:[#allocation7] sm:$0xf]
    %v79 = vld [vmem:[#allocation8] sm:$0xf]
    %v80 = vld [vmem:[#allocation8 + $0x4] sm:$0xf]
    %v81 = vld [vmem:[#allocation8 + $0x8] sm:$0xf]
    %v82 = vld [vmem:[#allocation8 + $0xc] sm:$0xf]
    %v83 = vld [vmem:[#allocation8 + $0x10] sm:$0xf]
    %v84 = vld [vmem:[#allocation8 + $0x14] sm:$0xf]
    %v85 = vld [vmem:[#allocation8 + $0x18] sm:$0xf]
    %v86 = vld [vmem:[#allocation8 + $0x1c] sm:$0xf]
    %v87 = vlaneseq
    %v88 = vshrl.u32 %v87, 7
    %v89 = vlaneseq
    %v90 = vand.u32 %v89, 127
    %vm91 = vcmp.gt.f32.partialorder %v72, 0.5
    %vm92 = vcmp.gt.f32.partialorder %v73, 0.5
    %vm93 = vcmp.eq.s32.totalorder %v88, %v90
    %v94 = vsel %vm93, 1, 0
    %vm95 = vcmp.eq.s32.totalorder %v94, 1
    %v96 = vsel %vm95, 1, 0
    %97 = vrot.lane.b32.xlu0 %v96, 32
    %v98 = vpop.permute.xlu0 %97
    %vm99 = vcmp.ne.s32.totalorder %v98, 0
    %vm100 = vmor %vm91, %vm99
    %vm101 = vmor %vm92, %vm99
    %v102 = vpack.c.bf16 %v73, %v72
    %v107 = vunpack.c.l.b16 %v74
    %v108 = vunpack.c.l.b16 %v75
    %v109 = vunpack.c.l.b16 %v76
    %v110 = vunpack.c.l.b16 %v77
    %v111 = vpack.c.b16 %v108, %v107
    %v112 = vpack.c.b16 %v110, %v109
    %vm115 = vcmask 261120
    %v117 = vsel %vm115, %v102, 0
    %119 = vmatprep.subr.bf16.mxu0 0
    %120 = vmatpush1.bf16.msra.mxu0 %v111
    %121 = vmatprep.subr.bf16.mxu0 0
    %122 = vmatpush1.bf16.msra.mxu0 %v112
    %123 = vmatprep.subr.bf16.mxu0 0
    %124 = vmatpush1.bf16.msra.mxu0 0
    %125 = vmatprep.subr.bf16.mxu0 0
    %126 = vmatpush1.bf16.msra.mxu0 0
    %127 = vmatprep.subr.bf16.mxu0 0
    %128 = vmatpush1.bf16.msra.mxu0 0
    %129 = vmatprep.subr.bf16.mxu0 0
    %130 = vmatpush1.bf16.msra.mxu0 0
    %131 = vmatprep.subr.bf16.mxu0 0
    %132 = vmatpush1.bf16.msra.mxu0 0
    %133 = vmatprep.subr.bf16.mxu0 0
    %134 = vmatpush1.bf16.msra.mxu0 0
    %135 = vmatprep.subr.bf16.mxu0 0
    %136 = vmatpush1.bf16.msra.mxu0 0
    %137 = vmatprep.subr.bf16.mxu0 0
    %138 = vmatpush1.bf16.msra.mxu0 0
    %139 = vmatprep.subr.bf16.mxu0 0
    %140 = vmatpush1.bf16.msra.mxu0 0
    %141 = vmatprep.subr.bf16.mxu0 0
    %142 = vmatpush1.bf16.msra.mxu0 0
    %143 = vmatprep.subr.bf16.mxu0 0
    %144 = vmatpush1.bf16.msra.mxu0 0
    %145 = vmatprep.subr.bf16.mxu0 0
    %146 = vmatpush1.bf16.msra.mxu0 0
    %147 = vmatprep.subr.bf16.mxu0 0
    %148 = vmatpush1.bf16.msra.mxu0 0
    %149 = vmatprep.subr.bf16.mxu0 0
    %150 = vmatpush1.bf16.msra.mxu0 0
    %151 = vmatprep.mubr.bf16.mxu0 0
    %152 = vmatmul.mubr.bf16.gmra.mrb[0].mxu0 %v117
    %v153 = vpop.f32.mrb[0].mxu0
    %v154 = vadd.f32 0.0, %v153
    %v155 = vpop.f32.mrb[0].mxu0
    %v156 = vpop.f32.mrb[0].mxu0
    %v157 = vadd.f32 0.0, %v156
    %v158 = vpop.f32.mrb[0].mxu0
    %159 = vdwg.mxu0
    %v160 = vtanh.pop %v154
    %v161 = vtanh.pop %v157
    %v162 = vlaneseq
    %v163 = vshrl.u32 %v162, 7
    %v164 = vsub.s32 0, %v163
    %v165 = vrot.slane %v78, %v164
    %v166 = vmul.f32 %v160, %v165
    %v167 = vmul.f32 %v161, %v165
    %v168 = vsel %vm115, %v166, 0.0
    %169 = vadd.xlane.f32.xlu0 %v168
    %v170 = vpop.xlane.xlu0 %169
    %v171 = vsel %vm115, %v167, 0.0
    %172 = vadd.xlane.f32.xlu0 %v171
    %v173 = vpop.xlane.xlu0 %172
    %v174 = vlaneseq
    %v175 = vshrl.u32 %v174, 7
    %v176 = vsub.s32 1, %v175
    %v177 = vrot.slane %v78, %v176
    %v178 = vmul.f32 %v160, %v177
    %v179 = vmul.f32 %v161, %v177
    %v180 = vsel %vm115, %v178, 0.0
    %181 = vadd.xlane.f32.xlu0 %v180
    %v182 = vpop.xlane.xlu0 %181
    %v183 = vsel %vm115, %v179, 0.0
    %184 = vadd.xlane.f32.xlu0 %v183
    %v185 = vpop.xlane.xlu0 %184
    %186 = vxpose.xlu0.b32.start [1/16] %v182, 128
    %187 = vxpose.xlu0.b32.cont [2/16] 0.0, 128
    %188 = vxpose.xlu0.b32.cont [3/16] 0.0, 128
    %189 = vxpose.xlu0.b32.cont [4/16] 0.0, 128
    %190 = vxpose.xlu0.b32.cont [5/16] 0.0, 128
    %191 = vxpose.xlu0.b32.cont [6/16] 0.0, 128
    %192 = vxpose.xlu0.b32.cont [7/16] 0.0, 128
    %193 = vxpose.xlu0.b32.cont [8/16] 0.0, 128
    %194 = vxpose.xlu0.b32.cont [9/16] 0.0, 128
    %195 = vxpose.xlu0.b32.cont [10/16] 0.0, 128
    %196 = vxpose.xlu0.b32.cont [11/16] 0.0, 128
    %197 = vxpose.xlu0.b32.cont [12/16] 0.0, 128
    %198 = vxpose.xlu0.b32.cont [13/16] 0.0, 128
    %199 = vxpose.xlu0.b32.cont [14/16] 0.0, 128
    %200 = vxpose.xlu0.b32.cont [15/16] 0.0, 128
    %201 = vxpose.xlu0.b32.end [16/16] 0.0, 128
    %v202 = vpop.trf.xlu0
    %v203 = vpop.trf.xlu0
    %v204 = vpop.trf.xlu0
    %v205 = vpop.trf.xlu0
    %v206 = vpop.trf.xlu0
    %v207 = vpop.trf.xlu0
    %v208 = vpop.trf.xlu0
    %v209 = vpop.trf.xlu0
    %v210 = vpop.trf.xlu0
    %v211 = vpop.trf.xlu0
    %v212 = vpop.trf.xlu0
    %v213 = vpop.trf.xlu0
    %v214 = vpop.trf.xlu0
    %v215 = vpop.trf.xlu0
    %v216 = vpop.trf.xlu0
    %v217 = vpop.trf.xlu0
    %218 = vxpose.xlu0.b32.start [1/16] %v185, 128
    %219 = vxpose.xlu0.b32.cont [2/16] 0.0, 128
    %220 = vxpose.xlu0.b32.cont [3/16] 0.0, 128
    %221 = vxpose.xlu0.b32.cont [4/16] 0.0, 128
    %222 = vxpose.xlu0.b32.cont [5/16] 0.0, 128
    %223 = vxpose.xlu0.b32.cont [6/16] 0.0, 128
    %224 = vxpose.xlu0.b32.cont [7/16] 0.0, 128
    %225 = vxpose.xlu0.b32.cont [8/16] 0.0, 128
    %226 = vxpose.xlu0.b32.cont [9/16] 0.0, 128
    %227 = vxpose.xlu0.b32.cont [10/16] 0.0, 128
    %228 = vxpose.xlu0.b32.cont [11/16] 0.0, 128
    %229 = vxpose.xlu0.b32.cont [12/16] 0.0, 128
    %230 = vxpose.xlu0.b32.cont [13/16] 0.0, 128
    %231 = vxpose.xlu0.b32.cont [14/16] 0.0, 128
    %232 = vxpose.xlu0.b32.cont [15/16] 0.0, 128
    %233 = vxpose.xlu0.b32.end [16/16] 0.0, 128
    %v234 = vpop.trf.xlu0
    %v235 = vpop.trf.xlu0
    %v236 = vpop.trf.xlu0
    %v237 = vpop.trf.xlu0
    %v238 = vpop.trf.xlu0
    %v239 = vpop.trf.xlu0
    %v240 = vpop.trf.xlu0
    %v241 = vpop.trf.xlu0
    %v242 = vpop.trf.xlu0
    %v243 = vpop.trf.xlu0
    %v244 = vpop.trf.xlu0
    %v245 = vpop.trf.xlu0
    %v246 = vpop.trf.xlu0
    %v247 = vpop.trf.xlu0
    %v248 = vpop.trf.xlu0
    %v249 = vpop.trf.xlu0
    %v250 = vlaneseq
    %v251 = vshrl.u32 %v250, 7
    %v252 = vsub.s32 0, %v251
    %v253 = vrot.slane %v202, %v252
    %v254 = vlaneseq
    %v255 = vshrl.u32 %v254, 7
    %v256 = vsub.s32 0, %v255
    %v257 = vrot.slane %v234, %v256
    %v258 = vadd.f32 %v170, %v253
    %v259 = vadd.f32 %v173, %v257
    %vm260 = vcmp.gt.f32.partialorder %v258, 0.0
    %vm261 = vcmp.gt.f32.partialorder %v259, 0.0
    %v262 = vmul.f32 %v258, 0.2
    %v263 = vmul.f32 %v259, 0.2
    %v264 = vsel %vm260, %v258, %v262
    %v265 = vsel %vm261, %v259, %v263
    %268 = vrot.lane.b32.xlu0 %v264, 32
    %v269 = vpop.permute.xlu0 %268
    %270 = vrot.lane.b32.xlu0 %v265, 32
    %v271 = vpop.permute.xlu0 %270
    %v274 = vsel %vm100, %v269, -1e+30
    %v275 = vsel %vm101, %v271, -1e+30
    %vm276 = vcmask 326912
    %v277 = vsel %vm276, %v274, -inf
    %278 = vmax.xlane.f32.xlu0 %v277
    %v279 = vpop.xlane.xlu0 %278
    %v280 = vsel %vm276, %v275, -inf
    %281 = vmax.xlane.f32.xlu0 %v280
    %v282 = vpop.xlane.xlu0 %281
    %v283 = vsub.f32 %v274, %v279
    %v284 = vsub.f32 %v275, %v282
    %v285 = vmul.f32 %v283, 1.442695
    %v286 = vpow.pop %v285
    %v287 = vmul.f32 %v284, 1.442695
    %v288 = vpow.pop %v287
    %291 = vrot.lane.b32.xlu0 %v286, 96
    %v292 = vpop.permute.xlu0 %291
    %293 = vrot.lane.b32.xlu0 %v288, 96
    %v294 = vpop.permute.xlu0 %293
    %vm297 = vcmask 64512
    %v298 = vsel %vm297, %v292, 0.0
    %299 = vadd.xlane.f32.xlu0 %v298
    %v300 = vpop.xlane.xlu0 %299
    %v301 = vsel %vm297, %v294, 0.0
    %302 = vadd.xlane.f32.xlu0 %v301
    %v303 = vpop.xlane.xlu0 %302
    %v304 = vrcp.pop %v300
    %v305 = vrcp.pop %v303
    %v306 = vmul.f32 %v286, %v304
    %v307 = vmul.f32 %v288, %v305
    %v308 = vpack.c.bf16 %v306, %v306
    %v309 = vpack.c.bf16 %v307, %v307
    %v310 = vpack.c.bf16 %v154, %v154
    %v311 = vpack.c.bf16 %v157, %v157
    %v312 = vlaneseq
    %v313 = vshrl.u32 %v312, 7
    %v314 = vsub.s32 2, %v313
    %v315 = vrot.slane %v78, %v314
    %317 = vrot.lane.b32.xlu0 %v308, 96
    %v318 = vpop.permute.xlu0 %317
    %v320 = vsel %vm297, %v318, 0
    %vm322 = vcmask 1043456
    %v324 = vsel %vm322, %v310, 0
    %326 = vmatprep.subr.bf16.mxu0 0
    %327 = vmatpush1.bf16.msra.mxu0 %v324
    %328 = vmatprep.subr.bf16.mxu0 0
    %329 = vmatpush1.bf16.msra.mxu0 0
    %330 = vmatprep.subr.bf16.mxu0 0
    %331 = vmatpush1.bf16.msra.mxu0 0
    %332 = vmatprep.subr.bf16.mxu0 0
    %333 = vmatpush1.bf16.msra.mxu0 0
    %334 = vmatprep.subr.bf16.mxu0 0
    %335 = vmatpush1.bf16.msra.mxu0 0
    %336 = vmatprep.subr.bf16.mxu0 0
    %337 = vmatpush1.bf16.msra.mxu0 0
    %338 = vmatprep.subr.bf16.mxu0 0
    %339 = vmatpush1.bf16.msra.mxu0 0
    %340 = vmatprep.subr.bf16.mxu0 0
    %341 = vmatpush1.bf16.msra.mxu0 0
    %342 = vmatprep.subr.bf16.mxu0 0
    %343 = vmatpush1.bf16.msra.mxu0 0
    %344 = vmatprep.subr.bf16.mxu0 0
    %345 = vmatpush1.bf16.msra.mxu0 0
    %346 = vmatprep.subr.bf16.mxu0 0
    %347 = vmatpush1.bf16.msra.mxu0 0
    %348 = vmatprep.subr.bf16.mxu0 0
    %349 = vmatpush1.bf16.msra.mxu0 0
    %350 = vmatprep.subr.bf16.mxu0 0
    %351 = vmatpush1.bf16.msra.mxu0 0
    %352 = vmatprep.subr.bf16.mxu0 0
    %353 = vmatpush1.bf16.msra.mxu0 0
    %354 = vmatprep.subr.bf16.mxu0 0
    %355 = vmatpush1.bf16.msra.mxu0 0
    %356 = vmatprep.subr.bf16.mxu0 0
    %357 = vmatpush1.bf16.msra.mxu0 0
    %358 = vmatprep.mubr.bf16.mxu0 0
    %359 = vmatmul.mubr.bf16.gmra.mrb[0].mxu0 %v320
    %v360 = vpop.f32.mrb[0].mxu0
    %v361 = vadd.f32 %v315, %v360
    %v362 = vpop.f32.mrb[0].mxu0
    %v363 = vpop.f32.mrb[0].mxu0
    %v364 = vpop.f32.mrb[0].mxu0
    %365 = vdwg.mxu0
    %367 = vrot.lane.b32.xlu0 %v309, 96
    %v368 = vpop.permute.xlu0 %367
    %v370 = vsel %vm297, %v368, 0
    %v373 = vsel %vm322, %v311, 0
    %375 = vmatprep.subr.bf16.mxu0 0
    %376 = vmatpush1.bf16.msra.mxu0 %v373
    %377 = vmatprep.subr.bf16.mxu0 0
    %378 = vmatpush1.bf16.msra.mxu0 0
    %379 = vmatprep.subr.bf16.mxu0 0
    %380 = vmatpush1.bf16.msra.mxu0 0
    %381 = vmatprep.subr.bf16.mxu0 0
    %382 = vmatpush1.bf16.msra.mxu0 0
    %383 = vmatprep.subr.bf16.mxu0 0
    %384 = vmatpush1.bf16.msra.mxu0 0
    %385 = vmatprep.subr.bf16.mxu0 0
    %386 = vmatpush1.bf16.msra.mxu0 0
    %387 = vmatprep.subr.bf16.mxu0 0
    %388 = vmatpush1.bf16.msra.mxu0 0
    %389 = vmatprep.subr.bf16.mxu0 0
    %390 = vmatpush1.bf16.msra.mxu0 0
    %391 = vmatprep.subr.bf16.mxu0 0
    %392 = vmatpush1.bf16.msra.mxu0 0
    %393 = vmatprep.subr.bf16.mxu0 0
    %394 = vmatpush1.bf16.msra.mxu0 0
    %395 = vmatprep.subr.bf16.mxu0 0
    %396 = vmatpush1.bf16.msra.mxu0 0
    %397 = vmatprep.subr.bf16.mxu0 0
    %398 = vmatpush1.bf16.msra.mxu0 0
    %399 = vmatprep.subr.bf16.mxu0 0
    %400 = vmatpush1.bf16.msra.mxu0 0
    %401 = vmatprep.subr.bf16.mxu0 0
    %402 = vmatpush1.bf16.msra.mxu0 0
    %403 = vmatprep.subr.bf16.mxu0 0
    %404 = vmatpush1.bf16.msra.mxu0 0
    %405 = vmatprep.subr.bf16.mxu0 0
    %406 = vmatpush1.bf16.msra.mxu0 0
    %407 = vmatprep.mubr.bf16.mxu0 0
    %408 = vmatmul.mubr.bf16.gmra.mrb[0].mxu0 %v370
    %v409 = vpop.f32.mrb[0].mxu0
    %v410 = vadd.f32 %v315, %v409
    %v411 = vpop.f32.mrb[0].mxu0
    %v412 = vpop.f32.mrb[0].mxu0
    %v413 = vpop.f32.mrb[0].mxu0
    %414 = vdwg.mxu0
    %v415 = vpack.c.bf16 %v410, %v361
    %v417 = vsel %vm115, %v415, 0
    %419 = vmatprep.subr.bf16.mxu0 0
    %420 = vmatpush1.bf16.msra.mxu0 %v111
    %421 = vmatprep.subr.bf16.mxu0 0
    %422 = vmatpush1.bf16.msra.mxu0 %v112
    %423 = vmatprep.subr.bf16.mxu0 0
    %424 = vmatpush1.bf16.msra.mxu0 0
    %425 = vmatprep.subr.bf16.mxu0 0
    %426 = vmatpush1.bf16.msra.mxu0 0
    %427 = vmatprep.subr.bf16.mxu0 0
    %428 = vmatpush1.bf16.msra.mxu0 0
    %429 = vmatprep.subr.bf16.mxu0 0
    %430 = vmatpush1.bf16.msra.mxu0 0
    %431 = vmatprep.subr.bf16.mxu0 0
    %432 = vmatpush1.bf16.msra.mxu0 0
    %433 = vmatprep.subr.bf16.mxu0 0
    %434 = vmatpush1.bf16.msra.mxu0 0
    %435 = vmatprep.subr.bf16.mxu0 0
    %436 = vmatpush1.bf16.msra.mxu0 0
    %437 = vmatprep.subr.bf16.mxu0 0
    %438 = vmatpush1.bf16.msra.mxu0 0
    %439 = vmatprep.subr.bf16.mxu0 0
    %440 = vmatpush1.bf16.msra.mxu0 0
    %441 = vmatprep.subr.bf16.mxu0 0
    %442 = vmatpush1.bf16.msra.mxu0 0
    %443 = vmatprep.subr.bf16.mxu0 0
    %444 = vmatpush1.bf16.msra.mxu0 0
    %445 = vmatprep.subr.bf16.mxu0 0
    %446 = vmatpush1.bf16.msra.mxu0 0
    %447 = vmatprep.subr.bf16.mxu0 0
    %448 = vmatpush1.bf16.msra.mxu0 0
    %449 = vmatprep.subr.bf16.mxu0 0
    %450 = vmatpush1.bf16.msra.mxu0 0
    %451 = vmatprep.mubr.bf16.mxu0 0
    %452 = vmatmul.mubr.bf16.gmra.mrb[0].mxu0 %v417
    %v453 = vpop.f32.mrb[0].mxu0
    %v454 = vadd.f32 0.0, %v453
    %v455 = vpop.f32.mrb[0].mxu0
    %v456 = vpop.f32.mrb[0].mxu0
    %v457 = vadd.f32 0.0, %v456
    %v458 = vpop.f32.mrb[0].mxu0
    %459 = vdwg.mxu0
    %v460 = vtanh.pop %v454
    %v461 = vtanh.pop %v457
    %v462 = vmul.f32 %v460, %v165
    %v463 = vmul.f32 %v461, %v165
    %v464 = vsel %vm115, %v462, 0.0
    %465 = vadd.xlane.f32.xlu0 %v464
    %v466 = vpop.xlane.xlu0 %465
    %v467 = vsel %vm115, %v463, 0.0
    %468 = vadd.xlane.f32.xlu0 %v467
    %v469 = vpop.xlane.xlu0 %468
    %v470 = vmul.f32 %v460, %v177
    %v471 = vmul.f32 %v461, %v177
    %v472 = vsel %vm115, %v470, 0.0
    %473 = vadd.xlane.f32.xlu0 %v472
    %v474 = vpop.xlane.xlu0 %473
    %v475 = vsel %vm115, %v471, 0.0
    %476 = vadd.xlane.f32.xlu0 %v475
    %v477 = vpop.xlane.xlu0 %476
    %478 = vxpose.xlu0.b32.start [1/16] %v474, 128
    %479 = vxpose.xlu0.b32.cont [2/16] 0.0, 128
    %480 = vxpose.xlu0.b32.cont [3/16] 0.0, 128
    %481 = vxpose.xlu0.b32.cont [4/16] 0.0, 128
    %482 = vxpose.xlu0.b32.cont [5/16] 0.0, 128
    %483 = vxpose.xlu0.b32.cont [6/16] 0.0, 128
    %484 = vxpose.xlu0.b32.cont [7/16] 0.0, 128
    %485 = vxpose.xlu0.b32.cont [8/16] 0.0, 128
    %486 = vxpose.xlu0.b32.cont [9/16] 0.0, 128
    %487 = vxpose.xlu0.b32.cont [10/16] 0.0, 128
    %488 = vxpose.xlu0.b32.cont [11/16] 0.0, 128
    %489 = vxpose.xlu0.b32.cont [12/16] 0.0, 128
    %490 = vxpose.xlu0.b32.cont [13/16] 0.0, 128
    %491 = vxpose.xlu0.b32.cont [14/16] 0.0, 128
    %492 = vxpose.xlu0.b32.cont [15/16] 0.0, 128
    %493 = vxpose.xlu0.b32.end [16/16] 0.0, 128
    %v494 = vpop.trf.xlu0
    %v495 = vpop.trf.xlu0
    %v496 = vpop.trf.xlu0
    %v497 = vpop.trf.xlu0
    %v498 = vpop.trf.xlu0
    %v499 = vpop.trf.xlu0
    %v500 = vpop.trf.xlu0
    %v501 = vpop.trf.xlu0
    %v502 = vpop.trf.xlu0
    %v503 = vpop.trf.xlu0
    %v504 = vpop.trf.xlu0
    %v505 = vpop.trf.xlu0
    %v506 = vpop.trf.xlu0
    %v507 = vpop.trf.xlu0
    %v508 = vpop.trf.xlu0
    %v509 = vpop.trf.xlu0
    %510 = vxpose.xlu0.b32.start [1/16] %v477, 128
    %511 = vxpose.xlu0.b32.cont [2/16] 0.0, 128
    %512 = vxpose.xlu0.b32.cont [3/16] 0.0, 128
    %513 = vxpose.xlu0.b32.cont [4/16] 0.0, 128
    %514 = vxpose.xlu0.b32.cont [5/16] 0.0, 128
    %515 = vxpose.xlu0.b32.cont [6/16] 0.0, 128
    %516 = vxpose.xlu0.b32.cont [7/16] 0.0, 128
    %517 = vxpose.xlu0.b32.cont [8/16] 0.0, 128
    %518 = vxpose.xlu0.b32.cont [9/16] 0.0, 128
    %519 = vxpose.xlu0.b32.cont [10/16] 0.0, 128
    %520 = vxpose.xlu0.b32.cont [11/16] 0.0, 128
    %521 = vxpose.xlu0.b32.cont [12/16] 0.0, 128
    %522 = vxpose.xlu0.b32.cont [13/16] 0.0, 128
    %523 = vxpose.xlu0.b32.cont [14/16] 0.0, 128
    %524 = vxpose.xlu0.b32.cont [15/16] 0.0, 128
    %525 = vxpose.xlu0.b32.end [16/16] 0.0, 128
    %v526 = vpop.trf.xlu0
    %v527 = vpop.trf.xlu0
    %v528 = vpop.trf.xlu0
    %v529 = vpop.trf.xlu0
    %v530 = vpop.trf.xlu0
    %v531 = vpop.trf.xlu0
    %v532 = vpop.trf.xlu0
    %v533 = vpop.trf.xlu0
    %v534 = vpop.trf.xlu0
    %v535 = vpop.trf.xlu0
    %v536 = vpop.trf.xlu0
    %v537 = vpop.trf.xlu0
    %v538 = vpop.trf.xlu0
    %v539 = vpop.trf.xlu0
    %v540 = vpop.trf.xlu0
    %v541 = vpop.trf.xlu0
    %v542 = vlaneseq
    %v543 = vshrl.u32 %v542, 7
    %v544 = vsub.s32 0, %v543
    %v545 = vrot.slane %v494, %v544
    %v546 = vlaneseq
    %v547 = vshrl.u32 %v546, 7
    %v548 = vsub.s32 0, %v547
    %v549 = vrot.slane %v526, %v548
    %v550 = vadd.f32 %v466, %v545
    %v551 = vadd.f32 %v469, %v549
    %vm552 = vcmp.gt.f32.partialorder %v550, 0.0
    %vm553 = vcmp.gt.f32.partialorder %v551, 0.0
    %v554 = vmul.f32 %v550, 0.2
    %v555 = vmul.f32 %v551, 0.2
    %v556 = vsel %vm552, %v550, %v554
    %v557 = vsel %vm553, %v551, %v555
    %560 = vrot.lane.b32.xlu0 %v556, 32
    %v561 = vpop.permute.xlu0 %560
    %562 = vrot.lane.b32.xlu0 %v557, 32
    %v563 = vpop.permute.xlu0 %562
    %v566 = vsel %vm100, %v561, -1e+30
    %v567 = vsel %vm101, %v563, -1e+30
    %v568 = vsel %vm276, %v566, -inf
    %569 = vmax.xlane.f32.xlu0 %v568
    %v570 = vpop.xlane.xlu0 %569
    %v571 = vsel %vm276, %v567, -inf
    %572 = vmax.xlane.f32.xlu0 %v571
    %v573 = vpop.xlane.xlu0 %572
    %v574 = vsub.f32 %v566, %v570
    %v575 = vsub.f32 %v567, %v573
    %v576 = vmul.f32 %v574, 1.442695
    %v577 = vpow.pop %v576
    %v578 = vmul.f32 %v575, 1.442695
    %v579 = vpow.pop %v578
    %582 = vrot.lane.b32.xlu0 %v577, 96
    %v583 = vpop.permute.xlu0 %582
    %584 = vrot.lane.b32.xlu0 %v579, 96
    %v585 = vpop.permute.xlu0 %584
    %v588 = vsel %vm297, %v583, 0.0
    %589 = vadd.xlane.f32.xlu0 %v588
    %v590 = vpop.xlane.xlu0 %589
    %v591 = vsel %vm297, %v585, 0.0
    %592 = vadd.xlane.f32.xlu0 %v591
    %v593 = vpop.xlane.xlu0 %592
    %v594 = vrcp.pop %v590
    %v595 = vrcp.pop %v593
    %v596 = vmul.f32 %v577, %v594
    %v597 = vmul.f32 %v579, %v595
    %v598 = vpack.c.bf16 %v596, %v596
    %v599 = vpack.c.bf16 %v597, %v597
    %v600 = vpack.c.bf16 %v454, %v454
    %v601 = vpack.c.bf16 %v457, %v457
    %603 = vrot.lane.b32.xlu0 %v598, 96
    %v604 = vpop.permute.xlu0 %603
    %v606 = vsel %vm297, %v604, 0
    %v609 = vsel %vm322, %v600, 0
    %611 = vmatprep.subr.bf16.mxu0 0
    %612 = vmatpush1.bf16.msra.mxu0 %v609
    %613 = vmatprep.subr.bf16.mxu0 0
    %614 = vmatpush1.bf16.msra.mxu0 0
    %615 = vmatprep.subr.bf16.mxu0 0
    %616 = vmatpush1.bf16.msra.mxu0 0
    %617 = vmatprep.subr.bf16.mxu0 0
    %618 = vmatpush1.bf16.msra.mxu0 0
    %619 = vmatprep.subr.bf16.mxu0 0
    %620 = vmatpush1.bf16.msra.mxu0 0
    %621 = vmatprep.subr.bf16.mxu0 0
    %622 = vmatpush1.bf16.msra.mxu0 0
    %623 = vmatprep.subr.bf16.mxu0 0
    %624 = vmatpush1.bf16.msra.mxu0 0
    %625 = vmatprep.subr.bf16.mxu0 0
    %626 = vmatpush1.bf16.msra.mxu0 0
    %627 = vmatprep.subr.bf16.mxu0 0
    %628 = vmatpush1.bf16.msra.mxu0 0
    %629 = vmatprep.subr.bf16.mxu0 0
    %630 = vmatpush1.bf16.msra.mxu0 0
    %631 = vmatprep.subr.bf16.mxu0 0
    %632 = vmatpush1.bf16.msra.mxu0 0
    %633 = vmatprep.subr.bf16.mxu0 0
    %634 = vmatpush1.bf16.msra.mxu0 0
    %635 = vmatprep.subr.bf16.mxu0 0
    %636 = vmatpush1.bf16.msra.mxu0 0
    %637 = vmatprep.subr.bf16.mxu0 0
    %638 = vmatpush1.bf16.msra.mxu0 0
    %639 = vmatprep.subr.bf16.mxu0 0
    %640 = vmatpush1.bf16.msra.mxu0 0
    %641 = vmatprep.subr.bf16.mxu0 0
    %642 = vmatpush1.bf16.msra.mxu0 0
    %643 = vmatprep.mubr.bf16.mxu0 0
    %644 = vmatmul.mubr.bf16.gmra.mrb[0].mxu0 %v606
    %v645 = vpop.f32.mrb[0].mxu0
    %v646 = vadd.f32 %v315, %v645
    %v647 = vpop.f32.mrb[0].mxu0
    %v648 = vpop.f32.mrb[0].mxu0
    %v649 = vpop.f32.mrb[0].mxu0
    %650 = vdwg.mxu0
    %652 = vrot.lane.b32.xlu0 %v599, 96
    %v653 = vpop.permute.xlu0 %652
    %v655 = vsel %vm297, %v653, 0
    %v658 = vsel %vm322, %v601, 0
    %660 = vmatprep.subr.bf16.mxu0 0
    %661 = vmatpush1.bf16.msra.mxu0 %v658
    %662 = vmatprep.subr.bf16.mxu0 0
    %663 = vmatpush1.bf16.msra.mxu0 0
    %664 = vmatprep.subr.bf16.mxu0 0
    %665 = vmatpush1.bf16.msra.mxu0 0
    %666 = vmatprep.subr.bf16.mxu0 0
    %667 = vmatpush1.bf16.msra.mxu0 0
    %668 = vmatprep.subr.bf16.mxu0 0
    %669 = vmatpush1.bf16.msra.mxu0 0
    %670 = vmatprep.subr.bf16.mxu0 0
    %671 = vmatpush1.bf16.msra.mxu0 0
    %672 = vmatprep.subr.bf16.mxu0 0
    %673 = vmatpush1.bf16.msra.mxu0 0
    %674 = vmatprep.subr.bf16.mxu0 0
    %675 = vmatpush1.bf16.msra.mxu0 0
    %676 = vmatprep.subr.bf16.mxu0 0
    %677 = vmatpush1.bf16.msra.mxu0 0
    %678 = vmatprep.subr.bf16.mxu0 0
    %679 = vmatpush1.bf16.msra.mxu0 0
    %680 = vmatprep.subr.bf16.mxu0 0
    %681 = vmatpush1.bf16.msra.mxu0 0
    %682 = vmatprep.subr.bf16.mxu0 0
    %683 = vmatpush1.bf16.msra.mxu0 0
    %684 = vmatprep.subr.bf16.mxu0 0
    %685 = vmatpush1.bf16.msra.mxu0 0
    %686 = vmatprep.subr.bf16.mxu0 0
    %687 = vmatpush1.bf16.msra.mxu0 0
    %688 = vmatprep.subr.bf16.mxu0 0
    %689 = vmatpush1.bf16.msra.mxu0 0
    %690 = vmatprep.subr.bf16.mxu0 0
    %691 = vmatpush1.bf16.msra.mxu0 0
    %692 = vmatprep.mubr.bf16.mxu0 0
    %693 = vmatmul.mubr.bf16.gmra.mrb[0].mxu0 %v655
    %v694 = vpop.f32.mrb[0].mxu0
    %v695 = vadd.f32 %v315, %v694
    %v696 = vpop.f32.mrb[0].mxu0
    %v697 = vpop.f32.mrb[0].mxu0
    %v698 = vpop.f32.mrb[0].mxu0
    %699 = vdwg.mxu0
    %v700 = vmul.f32 %v72, %v72
    %v701 = vmul.f32 %v73, %v73
    %v704 = vrot.slane %v701, 7
    %vm705 = vcmask 1041409
    %v706 = vsel %vm705, %v704, %v700
    %vm708 = vcmask 254976
    %v709 = vsel %vm708, %v706, 0.0
    %710 = vadd.xlane.f32.xlu0 %v709
    %v711 = vpop.xlane.xlu0 %710
    %v712 = vmax.f32 %v711, 1e-24
    %v713 = vrsqrt.pop %v712
    %v715 = vrot.slane %v713, 1
    %v718 = vmul.f32 %v72, %v713
    %v719 = vmul.f32 %v73, %v715
    %v720 = vmul.f32 %v646, %v646
    %v721 = vmul.f32 %v695, %v695
    %v724 = vrot.slane %v721, 7
    %v725 = vsel %vm705, %v724, %v720
    %v727 = vsel %vm708, %v725, 0.0
    %728 = vadd.xlane.f32.xlu0 %v727
    %v729 = vpop.xlane.xlu0 %728
    %v730 = vmax.f32 %v729, 1e-24
    %v731 = vrsqrt.pop %v730
    %v733 = vrot.slane %v731, 1
    %v736 = vmul.f32 %v646, %v731
    %v737 = vmul.f32 %v695, %v733
    %v740 = vrot.slane %v719, 7
    %v741 = vsel %vm705, %v740, %v718
    %v745 = vrot.slane %v737, 7
    %v746 = vsel %vm705, %v745, %v736
    %747 = vrot.lane.b32.xlu0 %v746, 32
    %v748 = vpop.permute.xlu0 %747
    %v750 = vsel %vm115, %v741, %v748
    %v751 = vpack.c.bf16 %v750, %v750
    %v752 = vlaneseq
    %v753 = vshrl.u32 %v752, 7
    %v754 = vsub.s32 3, %v753
    %v755 = vrot.slane %v78, %v754
    %v764 = vunpack.c.l.b16 %v79
    %v765 = vunpack.c.l.b16 %v80
    %v766 = vunpack.c.l.b16 %v81
    %v767 = vunpack.c.l.b16 %v82
    %v768 = vunpack.c.l.b16 %v83
    %v769 = vunpack.c.l.b16 %v84
    %v770 = vunpack.c.l.b16 %v85
    %v771 = vunpack.c.l.b16 %v86
    %v772 = vpack.c.b16 %v765, %v764
    %v773 = vpack.c.b16 %v767, %v766
    %v774 = vpack.c.b16 %v769, %v768
    %v775 = vpack.c.b16 %v771, %v770
    %vm780 = vcmask 523264
    %v782 = vsel %vm780, %v751, 0
    %784 = vmatprep.subr.bf16.mxu0 0
    %785 = vmatpush1.bf16.msra.mxu0 %v772
    %786 = vmatprep.subr.bf16.mxu0 0
    %787 = vmatpush1.bf16.msra.mxu0 %v773
    %788 = vmatprep.subr.bf16.mxu0 0
    %789 = vmatpush1.bf16.msra.mxu0 %v774
    %790 = vmatprep.subr.bf16.mxu0 0
    %791 = vmatpush1.bf16.msra.mxu0 %v775
    %792 = vmatprep.subr.bf16.mxu0 0
    %793 = vmatpush1.bf16.msra.mxu0 0
    %794 = vmatprep.subr.bf16.mxu0 0
    %795 = vmatpush1.bf16.msra.mxu0 0
    %796 = vmatprep.subr.bf16.mxu0 0
    %797 = vmatpush1.bf16.msra.mxu0 0
    %798 = vmatprep.subr.bf16.mxu0 0
    %799 = vmatpush1.bf16.msra.mxu0 0
    %800 = vmatprep.subr.bf16.mxu0 0
    %801 = vmatpush1.bf16.msra.mxu0 0
    %802 = vmatprep.subr.bf16.mxu0 0
    %803 = vmatpush1.bf16.msra.mxu0 0
    %804 = vmatprep.subr.bf16.mxu0 0
    %805 = vmatpush1.bf16.msra.mxu0 0
    %806 = vmatprep.subr.bf16.mxu0 0
    %807 = vmatpush1.bf16.msra.mxu0 0
    %808 = vmatprep.subr.bf16.mxu0 0
    %809 = vmatpush1.bf16.msra.mxu0 0
    %810 = vmatprep.subr.bf16.mxu0 0
    %811 = vmatpush1.bf16.msra.mxu0 0
    %812 = vmatprep.subr.bf16.mxu0 0
    %813 = vmatpush1.bf16.msra.mxu0 0
    %814 = vmatprep.subr.bf16.mxu0 0
    %815 = vmatpush1.bf16.msra.mxu0 0
    %816 = vmatprep.mubr.bf16.mxu0 0
    %817 = vmatmul.mubr.bf16.gmra.mrb[0].mxu0 %v782
    %v818 = vpop.f32.mrb[0].mxu0
    %v819 = vadd.f32 %v755, %v818
    %v820 = vpop.f32.mrb[0].mxu0
    %v821 = vpop.f32.mrb[0].mxu0
    %v822 = vpop.f32.mrb[0].mxu0
    %823 = vdwg.mxu0
    %v824 = vmul.f32 %v819, %v819
    %v825 = vsel %vm708, %v824, 0.0
    %826 = vadd.xlane.f32.xlu0 %v825
    %v827 = vpop.xlane.xlu0 %826
    %v828 = vmax.f32 %v827, 1e-24
    %v829 = vrsqrt.pop %v828
    %v830 = vmul.f32 %v819, %v829
    %831 = vst.msk [vmem:[#allocation10] sm:$0x3] %vm708, %v830
    // Predicated region
    $region34: #{my_embedder_forward.1} parent=1 // pred_check
      _
    $region35: #{my_embedder_forward.1} parent=1 // pred_check_branch
      %833 = sbr.rel (0) target = $region37
    $region36: #{my_embedder_forward.1} parent=1 // pred_region
      %s835 = ssub.s32 32, 32
      %836 = vsyncadd [#allocation4], %s835
      %s838 = sshll.u32 [#allocation10], 4
      %s839 = int_to_ptr.vmem [resolvable:$true] %s838
      %841 = dma.vmem_to_hbm [thread:$0]  %s839, 32, %s4, [#allocation4]
    $region37: #{my_embedder_forward.1} parent=1 // pred_fallthru
      _
    // Predicated region
    $region38: #{my_embedder_forward.1} parent=1 // pred_check
      _
    $region39: #{my_embedder_forward.1} parent=1 // pred_check_branch
      %843 = sbr.rel (0) target = $region41
    $region40: #{my_embedder_forward.1} parent=1 // pred_region
      %844 = dma.done [#allocation4], 32
    $region41: #{my_embedder_forward.1} parent=1 // pred_fallthru
      _
    %845 = vsyncpa [#allocation3], 1
    %846 = vsyncpa [#allocation6], 1
    %847 = vsyncpa [#allocation9], 1
    %848 = vsyncpa [#allocation4], 1

</llo_original>
